<compile_context>
chip_gen: v7x
topology: tpu7x:2x2x1
jax: 0.10.0
libtpu: 0.0.40
codegen_flags: <defaults>
</compile_context>

<pallas_src>
import functools

import jax
import jax.numpy as jnp
from jax import lax
from jax.experimental import pallas as pl
from jax.experimental.pallas import tpu as pltpu

LANES = 128
H1, H2 = 16, 8          # hidden widths of the MLP
STRIP = 16              # bf16 sublane tile is (16, 128) -> keep strips aligned


def _round_up(n, m):
    return ((n + m - 1) // m) * m


def _slab_offsets(f_pad):
    """Row offsets of each parameter inside the packed (rows, 128) bf16 slab."""
    assert f_pad % STRIP == 0
    off_w1 = 0                       # (f_pad, 128)  real (F, 16)
    off_b1 = off_w1 + f_pad          # row 0 of a 16-row strip, real (16,)
    off_w2 = off_b1 + STRIP          # (128, 128)    real (16, 8)
    off_b2 = off_w2 + LANES          # real (8,)
    off_w3 = off_b2 + STRIP          # (128, 128)    real (8, C)
    off_b3 = off_w3 + LANES          # real (C,)
    rows = off_b3 + STRIP            # multiple of 16
    return off_w1, off_b1, off_w2, off_b2, off_w3, off_b3, rows


def penguin_mlp_kernel(x_ref, p_ref, o_ref, *, f_pad, num_classes):
    off_w1, off_b1, off_w2, off_b2, off_w3, off_b3, _ = _slab_offsets(f_pad)
    out_lanes = o_ref.shape[-1]

    x = x_ref[...].astype(jnp.bfloat16)                     # (TM, f_pad)

    # Layer 1: Linear(F, 16) + ReLU  (padded lanes/rows are zero -> exact).
    w1 = p_ref[off_w1:off_w1 + f_pad, :]                    # (f_pad, 128) bf16
    b1 = p_ref[off_b1:off_b1 + 1, :].astype(jnp.float32)    # (1, 128)
    h1 = jnp.dot(x, w1, preferred_element_type=jnp.float32) + b1
    h1 = jnp.maximum(h1, 0.0).astype(jnp.bfloat16)          # (TM, 128)

    # Layer 2: Linear(16, 8) + ReLU.
    w2 = p_ref[off_w2:off_w2 + LANES, :]                    # (128, 128) bf16
    b2 = p_ref[off_b2:off_b2 + 1, :].astype(jnp.float32)
    h2 = jnp.dot(h1, w2, preferred_element_type=jnp.float32) + b2
    h2 = jnp.maximum(h2, 0.0).astype(jnp.bfloat16)          # (TM, 128)

    # Layer 3: Linear(8, C).
    w3 = p_ref[off_w3:off_w3 + LANES, :]                    # (128, 128) bf16
    b3 = p_ref[off_b3:off_b3 + 1, :].astype(jnp.float32)
    logits = jnp.dot(h2, w3, preferred_element_type=jnp.float32) + b3

    # Mask padded lanes, then numerically-stable softmax over dim=1.
    lane = lax.broadcasted_iota(jnp.int32, logits.shape, 1)
    logits = jnp.where(lane < num_classes, logits, jnp.float32(-1e30))
    m = jnp.max(logits, axis=1, keepdims=True)
    e = jnp.exp(logits - m)
    denom = jnp.sum(e, axis=1, keepdims=True)
    probs = e / denom                     # exact divide: rows sum to 1 (f32)
    o_ref[...] = probs[:, :out_lanes].astype(o_ref.dtype)


def pack_params(params, input_size, output_size):
    """Pack all weights/biases into one lane-dense (rows, 128) bf16 slab."""
    assert H1 <= LANES and H2 <= LANES and output_size <= LANES
    f_pad = _round_up(max(input_size, 1), STRIP)
    off_w1, off_b1, off_w2, off_b2, off_w3, off_b3, rows = _slab_offsets(f_pad)
    slab = jnp.zeros((rows, LANES), jnp.bfloat16)
    bf = lambda a: a.astype(jnp.bfloat16)
    slab = slab.at[off_w1:off_w1 + input_size, :H1].set(bf(params["w1"]))
    slab = slab.at[off_b1, :H1].set(bf(params["b1"].reshape(-1)))
    slab = slab.at[off_w2:off_w2 + H1, :H2].set(bf(params["w2"]))
    slab = slab.at[off_b2, :H2].set(bf(params["b2"].reshape(-1)))
    slab = slab.at[off_w3:off_w3 + H2, :output_size].set(bf(params["w3"]))
    slab = slab.at[off_b3, :output_size].set(bf(params["b3"].reshape(-1)))
    return slab, f_pad


def penguin_model_forward(x, slab, f_pad, num_classes):
    """x: (B, input_size) float.  slab: packed params from pack_params."""
    x = x.astype(jnp.float32)
    B, F = x.shape
    rows = slab.shape[0]
    out_lanes = _round_up(max(num_classes, 1), 8)

    # Pad only the (tiny) feature dim; the batch dim stays ragged and Pallas
    # clips the last tile on store (no full batch-padded copy of x).
    if F != f_pad:
        x = jnp.pad(x, ((0, 0), (0, f_pad - F)))

    # Batch tile: up to 512 rows; guarantee >=2 grid steps when B allows so
    # the "parallel" batch axis can shard across both v7x TensorCores.
    tm = min(512, _round_up(B, 8))
    if B >= 16 and -(-B // tm) < 2:
        tm = _round_up(-(-B // 2), 8)
    grid = (pl.cdiv(B, tm),)

    kernel = functools.partial(
        penguin_mlp_kernel, f_pad=f_pad, num_classes=num_classes)

    out = pl.pallas_call(
        kernel,
        out_shape=jax.ShapeDtypeStruct((B, out_lanes), jnp.float32),
        grid_spec=pltpu.PrefetchScalarGridSpec(
            num_scalar_prefetch=0,
            grid=grid,
            in_specs=[
                pl.BlockSpec((tm, f_pad), lambda i: (i, 0)),     # x tiles
                pl.BlockSpec((rows, LANES), lambda i: (0, 0)),   # resident slab
            ],
            out_specs=pl.BlockSpec((tm, out_lanes), lambda i: (i, 0)),
        ),
        compiler_params=pltpu.CompilerParams(
            dimension_semantics=("parallel",)),
    )(x, slab)

    return out[:, :num_classes]


def init_params(key, input_size, output_size):
    """Deterministic init; weights stored as (in, out), biases as (out,)."""
    ks = jax.random.split(key, 6)

    def linear(kw, kb, fan_in, fan_out):
        bound = 1.0 / jnp.sqrt(fan_in)
        w = jax.random.uniform(kw, (fan_in, fan_out), jnp.float32,
                               -bound, bound)
        b = jax.random.uniform(kb, (fan_out,), jnp.float32, -bound, bound)
        return w, b

    w1, b1 = linear(ks[0], ks[1], input_size, H1)
    w2, b2 = linear(ks[2], ks[3], H1, H2)
    w3, b3 = linear(ks[4], ks[5], H2, output_size)
    return {"w1": w1, "b1": b1, "w2": w2, "b2": b2, "w3": w3, "b3": b3}


def _reference_forward(x, params, cast_dtype=None):
    """Pure-JAX reference; optionally rounds every dot input to cast_dtype."""
    if cast_dtype is None:
        c = lambda a: a
    else:
        c = lambda a: a.astype(cast_dtype).astype(jnp.float32)
    h1 = jnp.maximum(jnp.dot(c(x), c(params["w1"])) + c(params["b1"]), 0.0)
    h2 = jnp.maximum(jnp.dot(c(h1), c(params["w2"])) + c(params["b2"]), 0.0)
    logits = jnp.dot(c(h2), c(params["w3"])) + c(params["b3"])
    return jax.nn.softmax(logits, axis=1)


if __name__ == "__main__":
    # Penguins dataset: a handful of numeric features, 3 species.
    input_size = 6
    output_size = 3
    batch = 8

    key = jax.random.PRNGKey(0)
    kx, kp = jax.random.split(key)
    x = jax.random.normal(kx, (batch, input_size), dtype=jnp.float32)
    params = init_params(kp, input_size, output_size)

    slab, f_pad = pack_params(params, input_size, output_size)
    out = penguin_model_forward(x, slab, f_pad, output_size)
    out = jax.block_until_ready(out)

    assert out.shape == (batch, output_size)

    # Matched-precision reference (bf16 rounding at the same points).
    ref_bf16 = _reference_forward(x, params, cast_dtype=jnp.bfloat16)
    assert jnp.allclose(out, ref_bf16, atol=2e-3), "mismatch vs bf16 reference"

    # Full-precision reference (bf16 weights -> slightly looser tolerance).
    ref_f32 = _reference_forward(x, params)
    assert jnp.allclose(out, ref_f32, atol=2e-2), "mismatch vs f32 reference"

    # Exact divide in the kernel -> rows sum to 1 within f32 rounding.
    assert jnp.allclose(jnp.sum(out, axis=1), 1.0, atol=1e-5)

    print("KERNEL_OK")
</pallas_src>

<mosaic_0001>
module attributes {stable_mosaic.version = 11 : i64} {
  func.func @penguin_mlp_kernel(%arg0: i32, %arg1: memref<8x16xf32, #tpu.memory_space<vmem>>, %arg2: memref<320x128xbf16, #tpu.memory_space<vmem>>, %arg3: memref<8x8xf32, #tpu.memory_space<vmem>>) attributes {dimension_semantics = [#tpu.dimension_semantics<parallel>], iteration_bounds = array<i64: 1>, scalar_prefetch = 0 : i64, scratch_operands = 0 : i64, tpu.core_type = #tpu.core_type<tc>, window_params = [{transform_indices = @transform_0, window_bounds = array<i64: 8, 16>}, {pipeline_mode = #tpu.pipeline_mode<synchronous>, transform_indices = @transform_1, window_bounds = array<i64: 320, 128>}, {transform_indices = @transform_2, window_bounds = array<i64: 8, 8>}]} {
    %c0 = arith.constant 0 : index
    %c0_0 = arith.constant 0 : index
    %0 = vector.load %arg1[%c0, %c0_0] : memref<8x16xf32, #tpu.memory_space<vmem>>, vector<8x16xf32>
    %1 = arith.truncf %0 : vector<8x16xf32> to vector<8x16xbf16>
    %c0_1 = arith.constant 0 : index
    %c0_2 = arith.constant 0 : index
    %2 = vector.load %arg2[%c0_1, %c0_2] : memref<320x128xbf16, #tpu.memory_space<vmem>>, vector<16x128xbf16>
    %c16 = arith.constant 16 : index
    %c0_3 = arith.constant 0 : index
    %3 = vector.load %arg2[%c16, %c0_3] : memref<320x128xbf16, #tpu.memory_space<vmem>>, vector<1x128xbf16>
    %4 = arith.extf %3 : vector<1x128xbf16> to vector<1x128xf32>
    %cst = arith.constant dense<0.000000e+00> : vector<8x128xf32>
    %5 = tpu.matmul %1, %2, %cst {dimension_numbers = #tpu.dot_dimension_numbers<[1], [0], [0], [1], [0, 0, 1, 1], [], []>} : vector<8x16xbf16>, vector<16x128xbf16>, vector<8x128xf32> -> vector<8x128xf32>
    %6 = vector.broadcast %4 : vector<1x128xf32> to vector<8x128xf32>
    %7 = arith.addf %5, %6 : vector<8x128xf32>
    %cst_4 = arith.constant 0.000000e+00 : f32
    %8 = vector.broadcast %cst_4 : f32 to vector<8x128xf32>
    %9 = arith.maximumf %7, %8 : vector<8x128xf32>
    %10 = arith.truncf %9 : vector<8x128xf32> to vector<8x128xbf16>
    %c32 = arith.constant 32 : index
    %c0_5 = arith.constant 0 : index
    %11 = vector.load %arg2[%c32, %c0_5] : memref<320x128xbf16, #tpu.memory_space<vmem>>, vector<128x128xbf16>
    %c160 = arith.constant 160 : index
    %c0_6 = arith.constant 0 : index
    %12 = vector.load %arg2[%c160, %c0_6] : memref<320x128xbf16, #tpu.memory_space<vmem>>, vector<1x128xbf16>
    %13 = arith.extf %12 : vector<1x128xbf16> to vector<1x128xf32>
    %cst_7 = arith.constant dense<0.000000e+00> : vector<8x128xf32>
    %14 = tpu.matmul %10, %11, %cst_7 {dimension_numbers = #tpu.dot_dimension_numbers<[1], [0], [0], [1], [0, 0, 1, 1], [], []>} : vector<8x128xbf16>, vector<128x128xbf16>, vector<8x128xf32> -> vector<8x128xf32>
    %15 = vector.broadcast %13 : vector<1x128xf32> to vector<8x128xf32>
    %16 = arith.addf %14, %15 : vector<8x128xf32>
    %cst_8 = arith.constant 0.000000e+00 : f32
    %17 = vector.broadcast %cst_8 : f32 to vector<8x128xf32>
    %18 = arith.maximumf %16, %17 : vector<8x128xf32>
    %19 = arith.truncf %18 : vector<8x128xf32> to vector<8x128xbf16>
    %c176 = arith.constant 176 : index
    %c0_9 = arith.constant 0 : index
    %20 = vector.load %arg2[%c176, %c0_9] : memref<320x128xbf16, #tpu.memory_space<vmem>>, vector<128x128xbf16>
    %c304 = arith.constant 304 : index
    %c0_10 = arith.constant 0 : index
    %21 = vector.load %arg2[%c304, %c0_10] : memref<320x128xbf16, #tpu.memory_space<vmem>>, vector<1x128xbf16>
    %22 = arith.extf %21 : vector<1x128xbf16> to vector<1x128xf32>
    %cst_11 = arith.constant dense<0.000000e+00> : vector<8x128xf32>
    %23 = tpu.matmul %19, %20, %cst_11 {dimension_numbers = #tpu.dot_dimension_numbers<[1], [0], [0], [1], [0, 0, 1, 1], [], []>} : vector<8x128xbf16>, vector<128x128xbf16>, vector<8x128xf32> -> vector<8x128xf32>
    %24 = vector.broadcast %22 : vector<1x128xf32> to vector<8x128xf32>
    %25 = arith.addf %23, %24 : vector<8x128xf32>
    %26 = tpu.iota {dimensions = array<i32: 1>} : vector<8x128xi32>
    %c3_i32 = arith.constant 3 : i32
    %27 = vector.broadcast %c3_i32 : i32 to vector<8x128xi32>
    %28 = arith.cmpi slt, %26, %27 : vector<8x128xi32>
    %cst_12 = arith.constant -1.000000e+30 : f32
    %29 = vector.broadcast %cst_12 : f32 to vector<8x128xf32>
    %30 = arith.select %28, %25, %29 : vector<8x128xi1>, vector<8x128xf32>
    %cst_13 = arith.constant dense<0xFF800000> : vector<8xf32>
    %31 = vector.multi_reduction <maximumf>, %30, %cst_13 [1] : vector<8x128xf32> to vector<8xf32>
    %32 = vector.shape_cast %31 : vector<8xf32> to vector<8x1xf32>
    %33 = vector.broadcast %32 : vector<8x1xf32> to vector<8x128xf32>
    %34 = arith.subf %30, %33 : vector<8x128xf32>
    %35 = math.exp %34 : vector<8x128xf32>
    %cst_14 = arith.constant dense<0.000000e+00> : vector<8xf32>
    %36 = vector.multi_reduction <add>, %35, %cst_14 [1] : vector<8x128xf32> to vector<8xf32>
    %37 = vector.shape_cast %36 : vector<8xf32> to vector<8x1xf32>
    %38 = vector.broadcast %37 : vector<8x1xf32> to vector<8x128xf32>
    %39 = arith.divf %35, %38 : vector<8x128xf32>
    %40 = vector.extract_strided_slice %39 {offsets = [0, 0], sizes = [8, 8], strides = [1, 1]} : vector<8x128xf32> to vector<8x8xf32>
    %c0_15 = arith.constant 0 : index
    %c0_16 = arith.constant 0 : index
    %41 = vector.load %arg3[%c0_15, %c0_16] : memref<8x8xf32, #tpu.memory_space<vmem>>, vector<8x8xf32>
    tpu.vector_store %arg3[%c0_15, %c0_16], %40 {strides = array<i32>} : memref<8x8xf32, #tpu.memory_space<vmem>>, vector<8x8xf32>,
    return
  }
  func.func @transform_0(%arg0: i32) -> (i32, i32) {
    %c0_i32 = arith.constant 0 : i32
    %c0_i32_0 = arith.constant 0 : i32
    return %arg0, %c0_i32 : i32, i32
  }
  func.func @transform_1(%arg0: i32) -> (i32, i32) {
    %c0_i32 = arith.constant 0 : i32
    %c0_i32_0 = arith.constant 0 : i32
    %c0_i32_1 = arith.constant 0 : i32
    return %c0_i32, %c0_i32_0 : i32, i32
  }
  func.func @transform_2(%arg0: i32) -> (i32, i32) {
    %c0_i32 = arith.constant 0 : i32
    %c0_i32_0 = arith.constant 0 : i32
    return %arg0, %c0_i32 : i32, i32
  }
}

</mosaic_0001>

<llo_original>
// kernel: tpu_custom_call.1
$region0: #{tpu_custom_call.1}
  #allocation0 [shape = 'u32[]', space=smem, size = 0x4, offset = 0x4, fixed_abs, tag = 'smem constant byte address 0x4 - core index']
  #allocation1 [shape = 'u32[144,128]{1,0:T(1,128)}', space=vmem, size = 0x12000, scoped, tag = 'internal scratch']
  %s0 = inlined_call_operand.hbm [shape: f32[8,16], index: 0, kind: input, shape index: {}]
  %s1 = inlined_call_operand.hbm [shape: bf16[320,128], index: 1, kind: input, shape index: {}]
  %s2 = inlined_call_operand.hbm [shape: f32[8,8], index: 2, kind: output, shape index: {}]
  %s3 = sld [smem:[#allocation0]]
  $region26: #{tpu_custom_call.1} parent=0
    _
  %s5 = ssub.s32 1, %s3
  %s6 = scalar_select 0, %s5, %s3
  $region1: #{tpu_custom_call.1} parent=0
    #allocation2 [shape = 'u8[4096]{0}', space=vmem, size = 0x1000, scoped, tag = 'input window, operand 0, single buffered']
    #allocation3 [shape = 's32[1]{0}', space=sflag, size = 0x4, scoped, tag = 'scoped memory for tpu_custom_call.1']
    #allocation4 [shape = 's32[1]{0}', space=sflag, size = 0x4, scoped, tag = 'scoped memory for tpu_custom_call.1']
    #allocation5 [shape = 'u8[81920]{0}', space=vmem, size = 0x14000, scoped, tag = 'input window, operand 1, single buffered']
    #allocation6 [shape = 's32[1]{0}', space=sflag, size = 0x4, scoped, tag = 'scoped memory for tpu_custom_call.1']
    #allocation7 [shape = 'u8[4096]{0}', space=vmem, size = 0x1000, scoped, tag = 'output window, operand 0, single buffered']
    %7 = vsyncpa [#allocation3], 0
    %8 = vsyncpa [#allocation6], 0
    %9 = vsyncpa [#allocation4], 0
    // Predicated region
    $region2: #{tpu_custom_call.1} parent=1 // pred_check
      _
    $region3: #{tpu_custom_call.1} parent=1 // pred_check_branch
      %11 = sbr.rel (0) target = $region5
    $region4: #{tpu_custom_call.1} parent=1 // pred_region
      %s13 = ssub.s32 128, 128
      %14 = vsyncadd [#allocation3], %s13
      %s16 = sshll.u32 [#allocation2], 4
      %s17 = int_to_ptr.vmem [resolvable:$true] %s16
      %19 = dma.hbm_to_vmem [thread:$0]  %s0, 128, %s17, [#allocation3]
    $region5: #{tpu_custom_call.1} parent=1 // pred_fallthru
      _
    // Predicated region
    $region6: #{tpu_custom_call.1} parent=1 // pred_check
      _
    $region7: #{tpu_custom_call.1} parent=1 // pred_check_branch
      %21 = sbr.rel (0) target = $region9
    $region8: #{tpu_custom_call.1} parent=1 // pred_region
      %s23 = ssub.s32 2560, 2560
      %24 = vsyncadd [#allocation6], %s23
      %s25 = sshll.u32 [#allocation5], 4
      %s26 = int_to_ptr.vmem [resolvable:$true] %s25
      %31 = dma.hbm_to_vmem [thread:$0]  %s1, 2560, %s26, [#allocation6], 64, 64, 4
    $region9: #{tpu_custom_call.1} parent=1 // pred_fallthru
      _
    // Predicated region
    $region10: #{tpu_custom_call.1} parent=1 // pred_check
      _
    $region11: #{tpu_custom_call.1} parent=1 // pred_check_branch
      %33 = sbr.rel (0) target = $region13
    $region12: #{tpu_custom_call.1} parent=1 // pred_region
      %34 = dma.done [#allocation3], 128
    $region13: #{tpu_custom_call.1} parent=1 // pred_fallthru
      _
    // Predicated region
    $region14: #{tpu_custom_call.1} parent=1 // pred_check
      _
    $region15: #{tpu_custom_call.1} parent=1 // pred_check_branch
      %36 = sbr.rel (0) target = $region17
    $region16: #{tpu_custom_call.1} parent=1 // pred_region
      %37 = dma.done [#allocation6], 2560
    $region17: #{tpu_custom_call.1} parent=1 // pred_fallthru
      _
    %v39 = vld [vmem:[#allocation2] sm:$0xff]
    %v40 = vpack.c.bf16 %v39, %v39
    %v41 = vld [vmem:[#allocation5] sm:$0xf]
    %v42 = vld [vmem:[#allocation5 + $0x4] sm:$0xf]
    %v43 = vld [vmem:[#allocation5 + $0x8] sm:$0x1]
    %v44 = vunpack.c.l.bf16 %v43
    %v45 = vlaneseq
    %v46 = vshrl.u32 %v45, 7
    %v47 = vsub.s32 0, %v46
    %v48 = vrot.slane %v44, %v47
    %v51 = vunpack.c.l.b16 %v41
    %v52 = vunpack.c.l.b16 %v42
    %v53 = vpack.c.b16 %v52, %v51
    %vm55 = vcmask 130048
    %v57 = vsel %vm55, %v40, 0
    %59 = vmatprep.subr.bf16.mxu0 0
    %60 = vmatpush1.bf16.msra.mxu0 %v53
    %61 = vmatprep.subr.bf16.mxu0 0
    %62 = vmatpush1.bf16.msra.mxu0 0
    %63 = vmatprep.subr.bf16.mxu0 0
    %64 = vmatpush1.bf16.msra.mxu0 0
    %65 = vmatprep.subr.bf16.mxu0 0
    %66 = vmatpush1.bf16.msra.mxu0 0
    %67 = vmatprep.subr.bf16.mxu0 0
    %68 = vmatpush1.bf16.msra.mxu0 0
    %69 = vmatprep.subr.bf16.mxu0 0
    %70 = vmatpush1.bf16.msra.mxu0 0
    %71 = vmatprep.subr.bf16.mxu0 0
    %72 = vmatpush1.bf16.msra.mxu0 0
    %73 = vmatprep.subr.bf16.mxu0 0
    %74 = vmatpush1.bf16.msra.mxu0 0
    %75 = vmatprep.subr.bf16.mxu0 0
    %76 = vmatpush1.bf16.msra.mxu0 0
    %77 = vmatprep.subr.bf16.mxu0 0
    %78 = vmatpush1.bf16.msra.mxu0 0
    %79 = vmatprep.subr.bf16.mxu0 0
    %80 = vmatpush1.bf16.msra.mxu0 0
    %81 = vmatprep.subr.bf16.mxu0 0
    %82 = vmatpush1.bf16.msra.mxu0 0
    %83 = vmatprep.subr.bf16.mxu0 0
    %84 = vmatpush1.bf16.msra.mxu0 0
    %85 = vmatprep.subr.bf16.mxu0 0
    %86 = vmatpush1.bf16.msra.mxu0 0
    %87 = vmatprep.subr.bf16.mxu0 0
    %88 = vmatpush1.bf16.msra.mxu0 0
    %89 = vmatprep.subr.bf16.mxu0 0
    %90 = vmatpush1.bf16.msra.mxu0 0
    %91 = vmatprep.mubr.bf16.mxu0 0
    %92 = vmatmul.mubr.bf16.gmra.mrb[0].mxu0 %v57
    %v93 = vpop.f32.mrb[0].mxu0
    %v94 = vadd.f32 %v48, %v93
    %v95 = vpop.f32.mrb[0].mxu0
    %v96 = vpop.f32.mrb[0].mxu0
    %v97 = vpop.f32.mrb[0].mxu0
    %98 = vdwg.mxu0
    %v99 = vmax.f32 %v94, 0.0
    %v100 = vpack.c.bf16 %v99, %v99
    %v101 = vld [vmem:[#allocation5 + $0x10] sm:$0xf]
    %v102 = vld [vmem:[#allocation5 + $0x14] sm:$0xf]
    %v103 = vld [vmem:[#allocation5 + $0x18] sm:$0xf]
    %v104 = vld [vmem:[#allocation5 + $0x1c] sm:$0xf]
    %v105 = vld [vmem:[#allocation5 + $0x20] sm:$0xf]
    %v106 = vld [vmem:[#allocation5 + $0x24] sm:$0xf]
    %v107 = vld [vmem:[#allocation5 + $0x28] sm:$0xf]
    %v108 = vld [vmem:[#allocation5 + $0x2c] sm:$0xf]
    %v109 = vld [vmem:[#allocation5 + $0x30] sm:$0xf]
    %v110 = vld [vmem:[#allocation5 + $0x34] sm:$0xf]
    %v111 = vld [vmem:[#allocation5 + $0x38] sm:$0xf]
    %v112 = vld [vmem:[#allocation5 + $0x3c] sm:$0xf]
    %v113 = vld [vmem:[#allocation5 + $0x40] sm:$0xf]
    %v114 = vld [vmem:[#allocation5 + $0x44] sm:$0xf]
    %v115 = vld [vmem:[#allocation5 + $0x48] sm:$0xf]
    %v116 = vld [vmem:[#allocation5 + $0x4c] sm:$0xf]
    %v117 = vld [vmem:[#allocation5 + $0x50] sm:$0x1]
    %v118 = vunpack.c.l.bf16 %v117
    %v119 = vlaneseq
    %v120 = vshrl.u32 %v119, 7
    %v121 = vsub.s32 0, %v120
    %v122 = vrot.slane %v118, %v121
    %v139 = vunpack.c.l.b16 %v101
    %v140 = vunpack.c.l.b16 %v102
    %v141 = vunpack.c.l.b16 %v103
    %v142 = vunpack.c.l.b16 %v104
    %v143 = vunpack.c.l.b16 %v105
    %v144 = vunpack.c.l.b16 %v106
    %v145 = vunpack.c.l.b16 %v107
    %v146 = vunpack.c.l.b16 %v108
    %v147 = vunpack.c.l.b16 %v109
    %v148 = vunpack.c.l.b16 %v110
    %v149 = vunpack.c.l.b16 %v111
    %v150 = vunpack.c.l.b16 %v112
    %v151 = vunpack.c.l.b16 %v113
    %v152 = vunpack.c.l.b16 %v114
    %v153 = vunpack.c.l.b16 %v115
    %v154 = vunpack.c.l.b16 %v116
    %v155 = vpack.c.b16 %v140, %v139
    %v156 = vpack.c.b16 %v142, %v141
    %v157 = vpack.c.b16 %v144, %v143
    %v158 = vpack.c.b16 %v146, %v145
    %v159 = vpack.c.b16 %v148, %v147
    %v160 = vpack.c.b16 %v150, %v149
    %v161 = vpack.c.b16 %v152, %v151
    %v162 = vpack.c.b16 %v154, %v153
    %171 = vmatprep.subr.bf16.mxu0 0
    %172 = vmatpush1.bf16.msra.mxu0 %v155
    %173 = vmatprep.subr.bf16.mxu0 0
    %174 = vmatpush1.bf16.msra.mxu0 %v156
    %175 = vmatprep.subr.bf16.mxu0 0
    %176 = vmatpush1.bf16.msra.mxu0 %v157
    %177 = vmatprep.subr.bf16.mxu0 0
    %178 = vmatpush1.bf16.msra.mxu0 %v158
    %179 = vmatprep.subr.bf16.mxu0 0
    %180 = vmatpush1.bf16.msra.mxu0 %v159
    %181 = vmatprep.subr.bf16.mxu0 0
    %182 = vmatpush1.bf16.msra.mxu0 %v160
    %183 = vmatprep.subr.bf16.mxu0 0
    %184 = vmatpush1.bf16.msra.mxu0 %v161
    %185 = vmatprep.subr.bf16.mxu0 0
    %186 = vmatpush1.bf16.msra.mxu0 %v162
    %187 = vmatprep.subr.bf16.mxu0 0
    %188 = vmatpush1.bf16.msra.mxu0 0
    %189 = vmatprep.subr.bf16.mxu0 0
    %190 = vmatpush1.bf16.msra.mxu0 0
    %191 = vmatprep.subr.bf16.mxu0 0
    %192 = vmatpush1.bf16.msra.mxu0 0
    %193 = vmatprep.subr.bf16.mxu0 0
    %194 = vmatpush1.bf16.msra.mxu0 0
    %195 = vmatprep.subr.bf16.mxu0 0
    %196 = vmatpush1.bf16.msra.mxu0 0
    %197 = vmatprep.subr.bf16.mxu0 0
    %198 = vmatpush1.bf16.msra.mxu0 0
    %199 = vmatprep.subr.bf16.mxu0 0
    %200 = vmatpush1.bf16.msra.mxu0 0
    %201 = vmatprep.subr.bf16.mxu0 0
    %202 = vmatpush1.bf16.msra.mxu0 0
    %203 = vmatprep.mubr.bf16.mxu0 0
    %204 = vmatmul.mubr.bf16.gmra.mrb[0].mxu0 %v100
    %v205 = vpop.f32.mrb[0].mxu0
    %v206 = vadd.f32 %v122, %v205
    %v207 = vpop.f32.mrb[0].mxu0
    %v208 = vpop.f32.mrb[0].mxu0
    %v209 = vpop.f32.mrb[0].mxu0
    %210 = vdwg.mxu0
    %v211 = vmax.f32 %v206, 0.0
    %v212 = vpack.c.bf16 %v211, %v211
    %v213 = vld [vmem:[#allocation5 + $0x58] sm:$0xf]
    %v214 = vld [vmem:[#allocation5 + $0x5c] sm:$0xf]
    %v215 = vld [vmem:[#allocation5 + $0x60] sm:$0xf]
    %v216 = vld [vmem:[#allocation5 + $0x64] sm:$0xf]
    %v217 = vld [vmem:[#allocation5 + $0x68] sm:$0xf]
    %v218 = vld [vmem:[#allocation5 + $0x6c] sm:$0xf]
    %v219 = vld [vmem:[#allocation5 + $0x70] sm:$0xf]
    %v220 = vld [vmem:[#allocation5 + $0x74] sm:$0xf]
    %v221 = vld [vmem:[#allocation5 + $0x78] sm:$0xf]
    %v222 = vld [vmem:[#allocation5 + $0x7c] sm:$0xf]
    %v223 = vld [vmem:[#allocation5 + $0x80] sm:$0xf]
    %v224 = vld [vmem:[#allocation5 + $0x84] sm:$0xf]
    %v225 = vld [vmem:[#allocation5 + $0x88] sm:$0xf]
    %v226 = vld [vmem:[#allocation5 + $0x8c] sm:$0xf]
    %v227 = vld [vmem:[#allocation5 + $0x90] sm:$0xf]
    %v228 = vld [vmem:[#allocation5 + $0x94] sm:$0xf]
    %v229 = vld [vmem:[#allocation5 + $0x98] sm:$0x1]
    %v230 = vunpack.c.l.bf16 %v229
    %v231 = vlaneseq
    %v232 = vshrl.u32 %v231, 7
    %v233 = vsub.s32 0, %v232
    %v234 = vrot.slane %v230, %v233
    %v251 = vunpack.c.l.b16 %v213
    %v252 = vunpack.c.l.b16 %v214
    %v253 = vunpack.c.l.b16 %v215
    %v254 = vunpack.c.l.b16 %v216
    %v255 = vunpack.c.l.b16 %v217
    %v256 = vunpack.c.l.b16 %v218
    %v257 = vunpack.c.l.b16 %v219
    %v258 = vunpack.c.l.b16 %v220
    %v259 = vunpack.c.l.b16 %v221
    %v260 = vunpack.c.l.b16 %v222
    %v261 = vunpack.c.l.b16 %v223
    %v262 = vunpack.c.l.b16 %v224
    %v263 = vunpack.c.l.b16 %v225
    %v264 = vunpack.c.l.b16 %v226
    %v265 = vunpack.c.l.b16 %v227
    %v266 = vunpack.c.l.b16 %v228
    %v267 = vpack.c.b16 %v252, %v251
    %v268 = vpack.c.b16 %v254, %v253
    %v269 = vpack.c.b16 %v256, %v255
    %v270 = vpack.c.b16 %v258, %v257
    %v271 = vpack.c.b16 %v260, %v259
    %v272 = vpack.c.b16 %v262, %v261
    %v273 = vpack.c.b16 %v264, %v263
    %v274 = vpack.c.b16 %v266, %v265
    %283 = vmatprep.subr.bf16.mxu0 0
    %284 = vmatpush1.bf16.msra.mxu0 %v267
    %285 = vmatprep.subr.bf16.mxu0 0
    %286 = vmatpush1.bf16.msra.mxu0 %v268
    %287 = vmatprep.subr.bf16.mxu0 0
    %288 = vmatpush1.bf16.msra.mxu0 %v269
    %289 = vmatprep.subr.bf16.mxu0 0
    %290 = vmatpush1.bf16.msra.mxu0 %v270
    %291 = vmatprep.subr.bf16.mxu0 0
    %292 = vmatpush1.bf16.msra.mxu0 %v271
    %293 = vmatprep.subr.bf16.mxu0 0
    %294 = vmatpush1.bf16.msra.mxu0 %v272
    %295 = vmatprep.subr.bf16.mxu0 0
    %296 = vmatpush1.bf16.msra.mxu0 %v273
    %297 = vmatprep.subr.bf16.mxu0 0
    %298 = vmatpush1.bf16.msra.mxu0 %v274
    %299 = vmatprep.subr.bf16.mxu0 0
    %300 = vmatpush1.bf16.msra.mxu0 0
    %301 = vmatprep.subr.bf16.mxu0 0
    %302 = vmatpush1.bf16.msra.mxu0 0
    %303 = vmatprep.subr.bf16.mxu0 0
    %304 = vmatpush1.bf16.msra.mxu0 0
    %305 = vmatprep.subr.bf16.mxu0 0
    %306 = vmatpush1.bf16.msra.mxu0 0
    %307 = vmatprep.subr.bf16.mxu0 0
    %308 = vmatpush1.bf16.msra.mxu0 0
    %309 = vmatprep.subr.bf16.mxu0 0
    %310 = vmatpush1.bf16.msra.mxu0 0
    %311 = vmatprep.subr.bf16.mxu0 0
    %312 = vmatpush1.bf16.msra.mxu0 0
    %313 = vmatprep.subr.bf16.mxu0 0
    %314 = vmatpush1.bf16.msra.mxu0 0
    %315 = vmatprep.mubr.bf16.mxu0 0
    %316 = vmatmul.mubr.bf16.gmra.mrb[0].mxu0 %v212
    %v317 = vpop.f32.mrb[0].mxu0
    %v318 = vadd.f32 %v234, %v317
    %v319 = vpop.f32.mrb[0].mxu0
    %v320 = vpop.f32.mrb[0].mxu0
    %v321 = vpop.f32.mrb[0].mxu0
    %322 = vdwg.mxu0
    %v323 = vlaneseq
    %v324 = vand.u32 %v323, 127
    %vm325 = vcmp.lt.s32.totalorder %v324, 3
    %v326 = vsel %vm325, %v318, -1e+30
    %327 = vmax.xlane.f32.xlu0 %v326
    %v328 = vpop.xlane.xlu0 %327
    %v329 = vsub.f32 %v326, %v328
    %v330 = vmul.f32 %v329, 1.442695
    %v331 = vpow.pop %v330
    %332 = vadd.xlane.f32.xlu0 %v331
    %v333 = vpop.xlane.xlu0 %332
    %v334 = vrcp.pop %v333
    %v335 = vmul.f32 %v331, %v334
    %vm336 = vcmask 64512
    %337 = vst.msk [vmem:[#allocation7] sm:$0xff] %vm336, %v335
    // Predicated region
    $region18: #{tpu_custom_call.1} parent=1 // pred_check
      _
    $region19: #{tpu_custom_call.1} parent=1 // pred_check_branch
      %339 = sbr.rel (0) target = $region21
    $region20: #{tpu_custom_call.1} parent=1 // pred_region
      %s341 = ssub.s32 128, 128
      %342 = vsyncadd [#allocation4], %s341
      %s344 = sshll.u32 [#allocation7], 4
      %s345 = int_to_ptr.vmem [resolvable:$true] %s344
      %347 = dma.vmem_to_hbm [thread:$0]  %s345, 128, %s2, [#allocation4]
    $region21: #{tpu_custom_call.1} parent=1 // pred_fallthru
      _
    // Predicated region
    $region22: #{tpu_custom_call.1} parent=1 // pred_check
      _
    $region23: #{tpu_custom_call.1} parent=1 // pred_check_branch
      %349 = sbr.rel (0) target = $region25
    $region24: #{tpu_custom_call.1} parent=1 // pred_region
      %350 = dma.done [#allocation4], 128
    $region25: #{tpu_custom_call.1} parent=1 // pred_fallthru
      _
    %351 = vsyncpa [#allocation3], 1
    %352 = vsyncpa [#allocation6], 1
    %353 = vsyncpa [#allocation4], 1

</llo_original>
